<compile_context>
chip_gen: v6e
topology: v6e:2x2x1
jax: 0.10.0
libtpu: 0.0.40
codegen_flags: <defaults>
</compile_context>

<pallas_src>
import functools

import jax
import jax.numpy as jnp
from jax.experimental import pallas as pl
from jax.experimental.pallas import tpu as pltpu


# ----------------------------------------------------------------------------
# Kernel: per (TM, D) tile -> distances, argmin, dequantize, accumulate stats.
# ----------------------------------------------------------------------------
def _vq_kernel(x_ref, cb_ref, c2_ref, xd_ref, loss_ref, perp_ref,
               count_sc, sqerr_sc, *, M, TM):
    i = pl.program_id(0)
    nsteps = pl.num_programs(0)

    @pl.when(i == 0)
    def _():
        count_sc[...] = jnp.zeros_like(count_sc)
        sqerr_sc[...] = jnp.zeros_like(sqerr_sc)

    x = x_ref[...]                                   # (TM, D)
    cb = cb_ref[...]                                 # (Kc, D), VMEM-resident
    Kc = cb.shape[0]
    D = x.shape[1]

    # distance = ||x||^2 - 2 x.cb^T + ||cb||^2   (||cb||^2 precomputed once)
    x2 = jnp.sum(x * x, axis=-1, keepdims=True)      # (TM, 1)
    xc = jnp.einsum('md,kd->mk', x, cb,
                    preferred_element_type=jnp.float32)   # (TM, Kc)  MXU
    dist = x2 - 2.0 * xc + c2_ref[...]               # (TM, Kc)

    # first-index argmin (matches torch.min tie-breaking)
    col = jax.lax.broadcasted_iota(jnp.int32, dist.shape, 1)
    mind = jnp.min(dist, axis=-1, keepdims=True)
    idx = jnp.min(jnp.where(dist == mind, col, Kc), axis=-1,
                  keepdims=True)                     # (TM, 1)
    onehot = (col == idx).astype(jnp.float32)        # (TM, Kc)

    # dequantize == F.embedding(idx, codebook), as a one-hot MXU matmul
    xd = jnp.dot(onehot, cb, preferred_element_type=jnp.float32)  # (TM, D)
    xd_ref[...] = xd

    # mask rows past M (zero padding up to a TM multiple)
    rows = i * TM + jax.lax.broadcasted_iota(jnp.int32, (TM, 1), 0)
    valid = (rows < M).astype(jnp.float32)           # (TM, 1)

    diff = (x - xd) * valid
    sqerr_sc[...] += jnp.sum(diff * diff, keepdims=True)             # (1, 1)
    count_sc[...] += jnp.sum(onehot * valid, axis=0, keepdims=True)  # (1, Kc)

    @pl.when(i == nsteps - 1)
    def _():
        loss_ref[...] = sqerr_sc[...] / (M * D)      # F.mse_loss (mean)
        count = count_sc[...]
        prob = count / jnp.sum(count)
        perp_ref[...] = jnp.exp(-jnp.sum(prob * jnp.log(prob + 1e-7),
                                         keepdims=True))


# ----------------------------------------------------------------------------
# Wrapper: QuantizeEMAReset.forward (eval mode)
# ----------------------------------------------------------------------------
def quantize_ema_reset_forward(x, codebook, *, tm=512):
    """x: (N, width, T) f32, codebook: (nb_code, code_dim) f32, width==code_dim.

    Returns (x_d (N, width, T), commit_loss (), perplexity ()).
    """
    N, D, T = x.shape
    Kc, D_cb = codebook.shape
    assert D == D_cb, "width must equal code_dim"

    # preprocess: (N, D, T) -> (N*T, D)
    x_flat = jnp.transpose(x, (0, 2, 1)).reshape(-1, D)
    M = x_flat.shape[0]

    # M tile: multiple of 8 sublanes. tm~512 keeps the (TM, Kc) dist/onehot
    # temps + double-buffered (TM, D) tiles inside v7x's 64 MiB VMEM even for
    # Kc = 1024; larger tiles are fine on v5e/v6e.
    TM = max(8, min(int(tm), M))
    TM = -(-TM // 8) * 8                 # round up to a sublane multiple
    M_pad = -(-M // TM) * TM
    num_tiles = M_pad // TM

    x_pad = jnp.pad(x_flat, ((0, M_pad - M), (0, 0)))
    # codebook squared norms computed ONCE (not per grid step)
    c2 = jnp.sum(codebook * codebook, axis=-1)[None, :]       # (1, Kc)

    kern = functools.partial(_vq_kernel, M=M, TM=TM)
    xd_pad, loss, perp = pl.pallas_call(
        kern,
        out_shape=(
            jax.ShapeDtypeStruct((M_pad, D), jnp.float32),
            jax.ShapeDtypeStruct((1, 1), jnp.float32),
            jax.ShapeDtypeStruct((1, 1), jnp.float32),
        ),
        grid=(num_tiles,),
        in_specs=[
            pl.BlockSpec((TM, D), lambda i: (i, 0)),          # x tile
            pl.BlockSpec((Kc, D), lambda i: (0, 0)),          # codebook (resident)
            pl.BlockSpec((1, Kc), lambda i: (0, 0)),          # ||cb||^2 (resident)
        ],
        out_specs=(
            pl.BlockSpec((TM, D), lambda i: (i, 0)),          # dequantized tile
            pl.BlockSpec((1, 1), lambda i: (0, 0)),           # commit loss
            pl.BlockSpec((1, 1), lambda i: (0, 0)),           # perplexity
        ),
        scratch_shapes=[
            pltpu.VMEM((1, Kc), jnp.float32),                 # per-code counts
            pltpu.VMEM((1, 1), jnp.float32),                  # squared-error sum
        ],
        compiler_params=pltpu.CompilerParams(
            # the grid axis carries the loss/count reduction (shared scratch +
            # finalize at last step) -> must be "arbitrary", not "parallel".
            dimension_semantics=("arbitrary",),
            vmem_limit_bytes=48 * 1024 * 1024,
        ),
    )(x_pad, codebook, c2)

    xd = xd_pad[:M]
    commit_loss = loss[0, 0]
    perplexity = perp[0, 0]

    # straight-through estimator (numerically == xd in this no-grad eval path)
    x_st = x_flat + jax.lax.stop_gradient(xd - x_flat)

    # postprocess: (M, D) -> (N, width, T)
    x_out = jnp.transpose(x_st.reshape(N, T, D), (0, 2, 1))
    return x_out, commit_loss, perplexity


# ----------------------------------------------------------------------------
# Pure-JAX reference (mirrors the PyTorch eval path) for a sanity check.
# ----------------------------------------------------------------------------
def _reference_forward(x, codebook):
    N, D, T = x.shape
    xf = jnp.transpose(x, (0, 2, 1)).reshape(-1, D)
    dist = (jnp.sum(xf ** 2, axis=-1, keepdims=True)
            - 2.0 * xf @ codebook.T
            + jnp.sum(codebook ** 2, axis=-1)[None, :])
    idx = jnp.argmin(dist, axis=-1)
    xd = codebook[idx]
    loss = jnp.mean((xf - xd) ** 2)
    counts = jnp.sum(jax.nn.one_hot(idx, codebook.shape[0], dtype=jnp.float32),
                     axis=0)
    prob = counts / jnp.sum(counts)
    perp = jnp.exp(-jnp.sum(prob * jnp.log(prob + 1e-7)))
    out = jnp.transpose(xd.reshape(N, T, D), (0, 2, 1))
    return out, loss, perp


if __name__ == "__main__":
    # small deterministic config: N=2, width=code_dim=32, T=64 -> M = 128 rows
    N, width, T = 2, 32, 64
    nb_code = 128

    key = jax.random.PRNGKey(0)
    kx, kc = jax.random.split(key)
    x = jax.random.normal(kx, (N, width, T), jnp.float32)
    # PyTorch registers a zero codebook (filled by training-time EMA init);
    # use a deterministic random codebook so quantization is non-degenerate.
    codebook = jax.random.normal(kc, (nb_code, width), jnp.float32)

    # tm=32 -> 4 grid steps, exercising the tiled accumulate/finalize path
    x_d, commit_loss, perplexity = quantize_ema_reset_forward(x, codebook, tm=32)
    jax.block_until_ready((x_d, commit_loss, perplexity))

    assert x_d.shape == (N, width, T)
    assert commit_loss.shape == () and perplexity.shape == ()
    assert bool(jnp.isfinite(commit_loss)) and bool(jnp.isfinite(perplexity))

    # loose scalar check vs. the pure-JAX reference (MXU / XLA f32 matmuls are
    # not bitwise identical, so near-tie argmins may differ; the scalar stats
    # are insensitive to such flips).
    _, ref_loss, ref_perp = _reference_forward(x, codebook)
    assert abs(float(commit_loss) - float(ref_loss)) <= 5e-2 * max(1.0, float(ref_loss))
    assert abs(float(perplexity) - float(ref_perp)) <= 1e-1 * float(ref_perp)

    print("KERNEL_OK")
</pallas_src>

<mosaic_0001>
module attributes {stable_mosaic.version = 11 : i64} {
  func.func @_vq_kernel(%arg0: i32, %arg1: memref<32x32xf32, #tpu.memory_space<vmem>>, %arg2: memref<128x32xf32, #tpu.memory_space<vmem>>, %arg3: memref<1x128xf32, #tpu.memory_space<vmem>>, %arg4: memref<32x32xf32, #tpu.memory_space<vmem>>, %arg5: memref<1x1xf32, #tpu.memory_space<vmem>>, %arg6: memref<1x1xf32, #tpu.memory_space<vmem>>, %arg7: memref<1x128xf32, #tpu.memory_space<vmem>>, %arg8: memref<1x1xf32, #tpu.memory_space<vmem>>) attributes {dimension_semantics = [#tpu.dimension_semantics<arbitrary>], iteration_bounds = array<i64: 4>, scalar_prefetch = 0 : i64, scratch_operands = 2 : i64, tpu.core_type = #tpu.core_type<tc>, window_params = [{transform_indices = @transform_0, window_bounds = array<i64: 32, 32>}, {pipeline_mode = #tpu.pipeline_mode<synchronous>, transform_indices = @transform_1, window_bounds = array<i64: 128, 32>}, {pipeline_mode = #tpu.pipeline_mode<synchronous>, transform_indices = @transform_2, window_bounds = array<i64: 1, 128>}, {transform_indices = @transform_3, window_bounds = array<i64: 32, 32>}, {pipeline_mode = #tpu.pipeline_mode<synchronous>, transform_indices = @transform_4, window_bounds = array<i64: 1, 1>}, {pipeline_mode = #tpu.pipeline_mode<synchronous>, transform_indices = @transform_5, window_bounds = array<i64: 1, 1>}]} {
    %c0_i32 = arith.constant 0 : i32
    %0 = arith.cmpi eq, %arg0, %c0_i32 : i32
    %1 = arith.extui %0 : i1 to i32
    %c0_i32_0 = arith.constant 0 : i32
    %2 = arith.cmpi ne, %1, %c0_i32_0 : i32
    scf.if %2 {
      %cst_25 = arith.constant 0.000000e+00 : f32
      %61 = vector.broadcast %cst_25 : f32 to vector<1x128xf32>
      %c0_26 = arith.constant 0 : index
      %c0_27 = arith.constant 0 : index
      %62 = vector.load %arg7[%c0_26, %c0_27] : memref<1x128xf32, #tpu.memory_space<vmem>>, vector<1x128xf32>
      tpu.vector_store %arg7[%c0_26, %c0_27], %61 {strides = array<i32>} : memref<1x128xf32, #tpu.memory_space<vmem>>, vector<1x128xf32>,
      %cst_28 = arith.constant 0.000000e+00 : f32
      %63 = vector.broadcast %cst_28 : f32 to vector<1x1xf32>
      %c0_29 = arith.constant 0 : index
      %c0_30 = arith.constant 0 : index
      %64 = vector.load %arg8[%c0_29, %c0_30] : memref<1x1xf32, #tpu.memory_space<vmem>>, vector<1x1xf32>
      tpu.vector_store %arg8[%c0_29, %c0_30], %63 {strides = array<i32>} : memref<1x1xf32, #tpu.memory_space<vmem>>, vector<1x1xf32>,
    } else {
    }
    %c0 = arith.constant 0 : index
    %c0_1 = arith.constant 0 : index
    %3 = vector.load %arg1[%c0, %c0_1] : memref<32x32xf32, #tpu.memory_space<vmem>>, vector<32x32xf32>
    %c0_2 = arith.constant 0 : index
    %c0_3 = arith.constant 0 : index
    %4 = vector.load %arg2[%c0_2, %c0_3] : memref<128x32xf32, #tpu.memory_space<vmem>>, vector<128x32xf32>
    %5 = arith.mulf %3, %3 : vector<32x32xf32>
    %cst = arith.constant dense<0.000000e+00> : vector<32xf32>
    %6 = vector.multi_reduction <add>, %5, %cst [1] : vector<32x32xf32> to vector<32xf32>
    %7 = vector.shape_cast %6 : vector<32xf32> to vector<32x1xf32>
    "tpu.trace_start"() <{level = 10 : i32, message = "md,kd->mk"}> : () -> ()
    %cst_4 = arith.constant dense<0.000000e+00> : vector<32x128xf32>
    %8 = tpu.matmul %3, %4, %cst_4 {dimension_numbers = #tpu.dot_dimension_numbers<[1], [1], [0], [0], [0, 0, 1, 0], [], []>} : vector<32x32xf32>, vector<128x32xf32>, vector<32x128xf32> -> vector<32x128xf32>
    "tpu.trace_stop"() : () -> ()
    %cst_5 = arith.constant 2.000000e+00 : f32
    %9 = vector.broadcast %cst_5 : f32 to vector<32x128xf32>
    %10 = arith.mulf %9, %8 : vector<32x128xf32>
    %11 = vector.broadcast %7 : vector<32x1xf32> to vector<32x128xf32>
    %12 = arith.subf %11, %10 : vector<32x128xf32>
    %c0_6 = arith.constant 0 : index
    %c0_7 = arith.constant 0 : index
    %13 = vector.load %arg3[%c0_6, %c0_7] : memref<1x128xf32, #tpu.memory_space<vmem>>, vector<1x128xf32>
    %14 = vector.broadcast %13 : vector<1x128xf32> to vector<32x128xf32>
    %15 = arith.addf %12, %14 : vector<32x128xf32>
    %16 = tpu.iota {dimensions = array<i32: 1>} : vector<32x128xi32>
    %cst_8 = arith.constant dense<0x7F800000> : vector<32xf32>
    %17 = vector.multi_reduction <minimumf>, %15, %cst_8 [1] : vector<32x128xf32> to vector<32xf32>
    %18 = vector.shape_cast %17 : vector<32xf32> to vector<32x1xf32>
    %19 = vector.broadcast %18 : vector<32x1xf32> to vector<32x128xf32>
    %20 = arith.cmpf oeq, %15, %19 : vector<32x128xf32>
    %c128_i32 = arith.constant 128 : i32
    %21 = vector.broadcast %c128_i32 : i32 to vector<32x128xi32>
    %22 = arith.select %20, %16, %21 : vector<32x128xi1>, vector<32x128xi32>
    %cst_9 = arith.constant dense<2147483647> : vector<32xi32>
    %23 = vector.multi_reduction <minsi>, %22, %cst_9 [1] : vector<32x128xi32> to vector<32xi32>
    %24 = vector.shape_cast %23 : vector<32xi32> to vector<32x1xi32>
    %25 = vector.broadcast %24 : vector<32x1xi32> to vector<32x128xi32>
    %26 = arith.cmpi eq, %16, %25 : vector<32x128xi32>
    %27 = arith.extui %26 : vector<32x128xi1> to vector<32x128xi32>
    %28 = arith.sitofp %27 : vector<32x128xi32> to vector<32x128xf32>
    %cst_10 = arith.constant dense<0.000000e+00> : vector<32x32xf32>
    %29 = tpu.matmul %28, %4, %cst_10 {dimension_numbers = #tpu.dot_dimension_numbers<[1], [0], [0], [1], [0, 0, 1, 1], [], []>} : vector<32x128xf32>, vector<128x32xf32>, vector<32x32xf32> -> vector<32x32xf32>
    %c0_11 = arith.constant 0 : index
    %c0_12 = arith.constant 0 : index
    %30 = vector.load %arg4[%c0_11, %c0_12] : memref<32x32xf32, #tpu.memory_space<vmem>>, vector<32x32xf32>
    tpu.vector_store %arg4[%c0_11, %c0_12], %29 {strides = array<i32>} : memref<32x32xf32, #tpu.memory_space<vmem>>, vector<32x32xf32>,
    %c32_i32 = arith.constant 32 : i32
    %31 = arith.muli %arg0, %c32_i32 : i32
    %32 = tpu.iota {dimensions = array<i32: 0>} : vector<32x1xi32>
    %33 = vector.broadcast %31 : i32 to vector<32x1xi32>
    %34 = arith.addi %33, %32 : vector<32x1xi32>
    %c128_i32_13 = arith.constant 128 : i32
    %35 = vector.broadcast %c128_i32_13 : i32 to vector<32x1xi32>
    %36 = arith.cmpi slt, %34, %35 : vector<32x1xi32>
    %37 = arith.extui %36 : vector<32x1xi1> to vector<32x1xi32>
    %38 = arith.sitofp %37 : vector<32x1xi32> to vector<32x1xf32>
    %39 = arith.subf %3, %29 : vector<32x32xf32>
    %40 = vector.broadcast %38 : vector<32x1xf32> to vector<32x32xf32>
    %41 = arith.mulf %39, %40 : vector<32x32xf32>
    %c0_14 = arith.constant 0 : index
    %c0_15 = arith.constant 0 : index
    %42 = vector.load %arg8[%c0_14, %c0_15] : memref<1x1xf32, #tpu.memory_space<vmem>>, vector<1x1xf32>
    %43 = arith.mulf %41, %41 : vector<32x32xf32>
    %44 = vector.shape_cast %43 : vector<32x32xf32> to vector<1x32x32xf32>
    %cst_16 = arith.constant dense<0.000000e+00> : vector<1xf32>
    %45 = vector.multi_reduction <add>, %44, %cst_16 [1, 2] : vector<1x32x32xf32> to vector<1xf32>
    %46 = vector.shape_cast %45 : vector<1xf32> to vector<1x1x1xf32>
    %47 = vector.extract %46[0, 0, 0] : f32 from vector<1x1x1xf32>
    %48 = vector.broadcast %47 : f32 to vector<1x1xf32>
    %49 = arith.addf %42, %48 : vector<1x1xf32>
    %c0_17 = arith.constant 0 : index
    %c0_18 = arith.constant 0 : index
    %50 = vector.load %arg8[%c0_17, %c0_18] : memref<1x1xf32, #tpu.memory_space<vmem>>, vector<1x1xf32>
    tpu.vector_store %arg8[%c0_17, %c0_18], %49 {strides = array<i32>} : memref<1x1xf32, #tpu.memory_space<vmem>>, vector<1x1xf32>,
    %c0_19 = arith.constant 0 : index
    %c0_20 = arith.constant 0 : index
    %51 = vector.load %arg7[%c0_19, %c0_20] : memref<1x128xf32, #tpu.memory_space<vmem>>, vector<1x128xf32>
    %52 = vector.broadcast %38 : vector<32x1xf32> to vector<32x128xf32>
    %53 = arith.mulf %28, %52 : vector<32x128xf32>
    %cst_21 = arith.constant dense<0.000000e+00> : vector<128xf32>
    %54 = vector.multi_reduction <add>, %53, %cst_21 [0] : vector<32x128xf32> to vector<128xf32>
    %55 = vector.shape_cast %54 : vector<128xf32> to vector<1x128xf32>
    %56 = arith.addf %51, %55 : vector<1x128xf32>
    %c0_22 = arith.constant 0 : index
    %c0_23 = arith.constant 0 : index
    %57 = vector.load %arg7[%c0_22, %c0_23] : memref<1x128xf32, #tpu.memory_space<vmem>>, vector<1x128xf32>
    tpu.vector_store %arg7[%c0_22, %c0_23], %56 {strides = array<i32>} : memref<1x128xf32, #tpu.memory_space<vmem>>, vector<1x128xf32>,
    %c3_i32 = arith.constant 3 : i32
    %58 = arith.cmpi eq, %arg0, %c3_i32 : i32
    %59 = arith.extui %58 : i1 to i32
    %c0_i32_24 = arith.constant 0 : i32
    %60 = arith.cmpi ne, %59, %c0_i32_24 : i32
    scf.if %60 {
      %c0_25 = arith.constant 0 : index
      %c0_26 = arith.constant 0 : index
      %61 = vector.load %arg8[%c0_25, %c0_26] : memref<1x1xf32, #tpu.memory_space<vmem>>, vector<1x1xf32>
      %cst_27 = arith.constant 4.096000e+03 : f32
      %62 = vector.broadcast %cst_27 : f32 to vector<1x1xf32>
      %63 = arith.divf %61, %62 : vector<1x1xf32>
      %c0_28 = arith.constant 0 : index
      %c0_29 = arith.constant 0 : index
      %64 = vector.load %arg5[%c0_28, %c0_29] : memref<1x1xf32, #tpu.memory_space<vmem>>, vector<1x1xf32>
      tpu.vector_store %arg5[%c0_28, %c0_29], %63 {strides = array<i32>} : memref<1x1xf32, #tpu.memory_space<vmem>>, vector<1x1xf32>,
      %c0_30 = arith.constant 0 : index
      %c0_31 = arith.constant 0 : index
      %65 = vector.load %arg7[%c0_30, %c0_31] : memref<1x128xf32, #tpu.memory_space<vmem>>, vector<1x128xf32>
      %66 = vector.shape_cast %65 : vector<1x128xf32> to vector<1x1x128xf32>
      %cst_32 = arith.constant dense<0.000000e+00> : vector<1xf32>
      %67 = vector.multi_reduction <add>, %66, %cst_32 [1, 2] : vector<1x1x128xf32> to vector<1xf32>
      %68 = vector.shape_cast %67 : vector<1xf32> to vector<1x1x1xf32>
      %69 = vector.extract %68[0, 0, 0] : f32 from vector<1x1x1xf32>
      %70 = vector.broadcast %69 : f32 to vector<1x128xf32>
      %71 = arith.divf %65, %70 : vector<1x128xf32>
      %cst_33 = arith.constant 1.000000e-07 : f32
      %72 = vector.broadcast %cst_33 : f32 to vector<1x128xf32>
      %73 = arith.addf %71, %72 : vector<1x128xf32>
      %74 = math.log %73 : vector<1x128xf32>
      %75 = arith.mulf %71, %74 : vector<1x128xf32>
      %76 = vector.shape_cast %75 : vector<1x128xf32> to vector<1x1x128xf32>
      %cst_34 = arith.constant dense<0.000000e+00> : vector<1xf32>
      %77 = vector.multi_reduction <add>, %76, %cst_34 [1, 2] : vector<1x1x128xf32> to vector<1xf32>
      %78 = vector.shape_cast %77 : vector<1xf32> to vector<1x1x1xf32>
      %79 = vector.extract %78[0, 0, 0] : f32 from vector<1x1x1xf32>
      %80 = vector.broadcast %79 : f32 to vector<1x1xf32>
      %cst_35 = arith.constant 0.000000e+00 : f32
      %81 = vector.broadcast %cst_35 : f32 to vector<1x1xf32>
      %82 = arith.subf %81, %80 : vector<1x1xf32>
      %83 = math.exp %82 : vector<1x1xf32>
      %c0_36 = arith.constant 0 : index
      %c0_37 = arith.constant 0 : index
      %84 = vector.load %arg6[%c0_36, %c0_37] : memref<1x1xf32, #tpu.memory_space<vmem>>, vector<1x1xf32>
      tpu.vector_store %arg6[%c0_36, %c0_37], %83 {strides = array<i32>} : memref<1x1xf32, #tpu.memory_space<vmem>>, vector<1x1xf32>,
    } else {
    }
    return
  }
  func.func @transform_0(%arg0: i32) -> (i32, i32) {
    %c0_i32 = arith.constant 0 : i32
    %c0_i32_0 = arith.constant 0 : i32
    return %arg0, %c0_i32 : i32, i32
  }
  func.func @transform_1(%arg0: i32) -> (i32, i32) {
    %c0_i32 = arith.constant 0 : i32
    %c0_i32_0 = arith.constant 0 : i32
    %c0_i32_1 = arith.constant 0 : i32
    return %c0_i32, %c0_i32_0 : i32, i32
  }
  func.func @transform_2(%arg0: i32) -> (i32, i32) {
    %c0_i32 = arith.constant 0 : i32
    %c0_i32_0 = arith.constant 0 : i32
    %c0_i32_1 = arith.constant 0 : i32
    return %c0_i32, %c0_i32_0 : i32, i32
  }
  func.func @transform_3(%arg0: i32) -> (i32, i32) {
    %c0_i32 = arith.constant 0 : i32
    %c0_i32_0 = arith.constant 0 : i32
    return %arg0, %c0_i32 : i32, i32
  }
  func.func @transform_4(%arg0: i32) -> (i32, i32) {
    %c0_i32 = arith.constant 0 : i32
    %c0_i32_0 = arith.constant 0 : i32
    %c0_i32_1 = arith.constant 0 : i32
    return %c0_i32, %c0_i32_0 : i32, i32
  }
  func.func @transform_5(%arg0: i32) -> (i32, i32) {
    %c0_i32 = arith.constant 0 : i32
    %c0_i32_0 = arith.constant 0 : i32
    %c0_i32_1 = arith.constant 0 : i32
    return %c0_i32, %c0_i32_0 : i32, i32
  }
}

</mosaic_0001>

<llo_original>
// kernel: tpu_custom_call.1
$region0: #{tpu_custom_call.1}
  #allocation0 [shape = 'u32[]', space=smem, size = 0x4, offset = 0x4, fixed_abs, tag = 'smem constant byte address 0x4 - core index']
  #allocation1 [shape = 'u32[144,128]{1,0:T(1,128)}', space=vmem, size = 0x12000, scoped, tag = 'internal scratch']
  #allocation2 [shape = 'f32[1,128]{1,0:T(1,128)}', space=vmem, size = 0x200, scoped, tag = 'scratch operand']
  #allocation3 [shape = 'f32[1,1]{1,0:T(1,128)}', space=vmem, size = 0x200, scoped, tag = 'scratch operand']
  %s0 = inlined_call_operand.vmem [shape: f32[128,32], index: 0, kind: input, shape index: {}]
  %s1 = inlined_call_operand.vmem [shape: f32[128,32], index: 1, kind: input, shape index: {}]
  %s2 = inlined_call_operand.vmem [shape: f32[1,128], index: 2, kind: input, shape index: {}]
  %s3 = inlined_call_operand.vmem [shape: f32[128,32], index: 3, kind: output, shape index: {0}]
  %s4 = inlined_call_operand.hbm [shape: f32[1,1], index: 4, kind: output, shape index: {1}]
  %s5 = inlined_call_operand.hbm [shape: f32[1,1], index: 5, kind: output, shape index: {2}]
  %6 = xla_tuple %s3, %s4, %s5
  %s7 = sld [smem:[#allocation0]]
  $region69: #{tpu_custom_call.1} parent=0
    _
  %s9 = ssub.s32 1, %s7
  %s10 = scalar_select 0, %s9, %s7
  $region1: #{tpu_custom_call.1} parent=0
    #allocation4 [shape = 'u8[512]{0}', space=vmem, size = 0x400, scoped, tag = 'output window, operand 1, single buffered']
    #allocation5 [shape = 's32[2]{0}', space=sflag, size = 0x8, scoped, tag = 'scoped memory for tpu_custom_call.1']
    #allocation6 [shape = 'u8[512]{0}', space=vmem, size = 0x400, scoped, tag = 'output window, operand 2, single buffered']
    #allocation7 [shape = 's32[1]{0}', space=sflag, size = 0x4, scoped, tag = 'scoped memory for tpu_custom_call.1']
    %11 = vsyncpa [#allocation5], 0
    %12 = vsyncpa [#allocation7], 0
    loop: start=0, step=1, limit=6
    $region2: #{tpu_custom_call.1} parent=1 // loop_pre_header
      _
    $region3: #{tpu_custom_call.1} parent=1 // loop_header
      %s14 = sphi 0, %s18
      %p15 = scmp.ge.s32.totalorder %s14, 6
      %s24 = sphi 0, %s26
      %s27 = sphi 0, %s24
      %s28 = sphi 0, %s27
      %s44 = sphi 0, %s28
      %s48 = sphi 0, %s48
      %s50 = sphi 0, %s48
      %s51 = sphi 0, %s50
      %s65 = sphi 0, %s51
      %s69 = sphi 0, %s69
      %s71 = sphi 0, %s69
      %s72 = sphi 0, %s71
      %s86 = sphi 0, %s72
      %s92 = sphi 0, %s94
      %s95 = sphi 0, %s92
      %s96 = sphi 0, %s95
      %s112 = sphi 0, %s96
      %s116 = sphi 0, %s116
      %s118 = sphi 0, %s116
      %s119 = sphi 0, %s118
      %s133 = sphi 0, %s119
      %s137 = sphi 0, %s137
      %s139 = sphi 0, %s137
      %s140 = sphi 0, %s139
      %s154 = sphi 0, %s140
    $region4: #{tpu_custom_call.1} parent=1 // loop_header_branch
      %17 = sbr.rel (%p15) target = $region8
    $region5: #{tpu_custom_call.1} parent=1 // loop_body
      %s19 = ssub.s32 %s14, 1
      %s20 = ssub.s32 %s14, 2
      %s21 = sadd.s32 %s14, 1
      %s22 = ssub.s32 %s14, %s21
      %p23 = scmp.eq.s32.totalorder %s22, 0
      %s25 = sadd.s32 %s24, 1
      %s26 = scalar_select %p23, %s24, %s25
      %p29 = pneg %p23
      %p30 = scmp.eq.s32.totalorder %s14, 3
      %p31 = por %p29, %p30
      %p32 = scmp.ne.s32.totalorder %s24, %s27
      %p33 = scmp.eq.s32.totalorder %s14, 0
      %p34 = por %p32, %p33
      %p35 = scmp.ne.s32.totalorder %s24, %s27
      %p36 = scmp.eq.s32.totalorder %s19, 3
      %p37 = por %p35, %p36
      %p38 = scmp.ne.s32.totalorder %s27, %s28
      %p39 = scmp.eq.s32.totalorder %s19, 0
      %p40 = por %p38, %p39
      %p41 = scmp.ne.s32.totalorder %s27, %s28
      %p42 = scmp.eq.s32.totalorder %s20, 3
      %p43 = por %p41, %p42
      %p45 = scmp.ne.s32.totalorder %s28, %s44
      %p46 = scmp.eq.s32.totalorder %s20, 0
      %p47 = por %p45, %p46
      %s49 = sadd.s32 %s48, 1
      %p52 = scmp.eq.s32.totalorder %s14, 3
      %p53 = scmp.ne.s32.totalorder %s48, %s50
      %p54 = scmp.eq.s32.totalorder %s14, 0
      %p55 = por %p53, %p54
      %p56 = scmp.ne.s32.totalorder %s48, %s50
      %p57 = scmp.eq.s32.totalorder %s19, 3
      %p58 = por %p56, %p57
      %p59 = scmp.ne.s32.totalorder %s50, %s51
      %p60 = scmp.eq.s32.totalorder %s19, 0
      %p61 = por %p59, %p60
      %p62 = scmp.ne.s32.totalorder %s50, %s51
      %p63 = scmp.eq.s32.totalorder %s20, 3
      %p64 = por %p62, %p63
      %p66 = scmp.ne.s32.totalorder %s51, %s65
      %p67 = scmp.eq.s32.totalorder %s20, 0
      %p68 = por %p66, %p67
      %s70 = sadd.s32 %s69, 1
      %p73 = scmp.eq.s32.totalorder %s14, 3
      %p74 = scmp.ne.s32.totalorder %s69, %s71
      %p75 = scmp.eq.s32.totalorder %s14, 0
      %p76 = por %p74, %p75
      %p77 = scmp.ne.s32.totalorder %s69, %s71
      %p78 = scmp.eq.s32.totalorder %s19, 3
      %p79 = por %p77, %p78
      %p80 = scmp.ne.s32.totalorder %s71, %s72
      %p81 = scmp.eq.s32.totalorder %s19, 0
      %p82 = por %p80, %p81
      %p83 = scmp.ne.s32.totalorder %s71, %s72
      %p84 = scmp.eq.s32.totalorder %s20, 3
      %p85 = por %p83, %p84
      %p87 = scmp.ne.s32.totalorder %s72, %s86
      %p88 = scmp.eq.s32.totalorder %s20, 0
      %p89 = por %p87, %p88
      %s90 = ssub.s32 %s14, %s21
      %p91 = scmp.eq.s32.totalorder %s90, 0
      %s93 = sadd.s32 %s92, 1
      %s94 = scalar_select %p91, %s92, %s93
      %p97 = pneg %p91
      %p98 = scmp.eq.s32.totalorder %s14, 3
      %p99 = por %p97, %p98
      %p100 = scmp.ne.s32.totalorder %s92, %s95
      %p101 = scmp.eq.s32.totalorder %s14, 0
      %p102 = por %p100, %p101
      %p103 = scmp.ne.s32.totalorder %s92, %s95
      %p104 = scmp.eq.s32.totalorder %s19, 3
      %p105 = por %p103, %p104
      %p106 = scmp.ne.s32.totalorder %s95, %s96
      %p107 = scmp.eq.s32.totalorder %s19, 0
      %p108 = por %p106, %p107
      %p109 = scmp.ne.s32.totalorder %s95, %s96
      %p110 = scmp.eq.s32.totalorder %s20, 3
      %p111 = por %p109, %p110
      %p113 = scmp.ne.s32.totalorder %s96, %s112
      %p114 = scmp.eq.s32.totalorder %s20, 0
      %p115 = por %p113, %p114
      %s117 = sadd.s32 %s116, 1
      %p120 = scmp.eq.s32.totalorder %s14, 3
      %p121 = scmp.ne.s32.totalorder %s116, %s118
      %p122 = scmp.eq.s32.totalorder %s14, 0
      %p123 = por %p121, %p122
      %p124 = scmp.ne.s32.totalorder %s116, %s118
      %p125 = scmp.eq.s32.totalorder %s19, 3
      %p126 = por %p124, %p125
      %p127 = scmp.ne.s32.totalorder %s118, %s119
      %p128 = scmp.eq.s32.totalorder %s19, 0
      %p129 = por %p127, %p128
      %p130 = scmp.ne.s32.totalorder %s118, %s119
      %p131 = scmp.eq.s32.totalorder %s20, 3
      %p132 = por %p130, %p131
      %p134 = scmp.ne.s32.totalorder %s119, %s133
      %p135 = scmp.eq.s32.totalorder %s20, 0
      %p136 = por %p134, %p135
      %s138 = sadd.s32 %s137, 1
      %p141 = scmp.eq.s32.totalorder %s14, 3
      %p142 = scmp.ne.s32.totalorder %s137, %s139
      %p143 = scmp.eq.s32.totalorder %s14, 0
      %p144 = por %p142, %p143
      %p145 = scmp.ne.s32.totalorder %s137, %s139
      %p146 = scmp.eq.s32.totalorder %s19, 3
      %p147 = por %p145, %p146
      %p148 = scmp.ne.s32.totalorder %s139, %s140
      %p149 = scmp.eq.s32.totalorder %s19, 0
      %p150 = por %p148, %p149
      %p151 = scmp.ne.s32.totalorder %s139, %s140
      %p152 = scmp.eq.s32.totalorder %s20, 3
      %p153 = por %p151, %p152
      %p155 = scmp.ne.s32.totalorder %s140, %s154
      %p156 = scmp.eq.s32.totalorder %s20, 0
      %p157 = por %p155, %p156
      %p158 = scmp.le.s32.totalorder 1, %s14
      %p159 = scmp.lt.s32.totalorder %s14, 5
      %p160 = pnand %p158, %p159
      %p161 = pneg %p160
      // Predicated region
      $region9: #{tpu_custom_call.1} parent=5 // pred_check
        _
      $region10: #{tpu_custom_call.1} parent=5 // pred_check_branch
        %163 = sbr.rel (%p160) target = $region12
      $region11: #{tpu_custom_call.1} parent=5 // pred_region
        %s164 = ssub.s32 %s14, 1
        // Predicated region
        $region13: #{tpu_custom_call.1} parent=11 // pred_check
          %p165 = pneg %p61
        $region14: #{tpu_custom_call.1} parent=11 // pred_check_branch
          %167 = sbr.rel (%p165) target = $region16
        $region15: #{tpu_custom_call.1} parent=11 // pred_region
          _
        $region16: #{tpu_custom_call.1} parent=11 // pred_fallthru
          _
        // Predicated region
        $region17: #{tpu_custom_call.1} parent=11 // pred_check
          %p168 = pneg %p82
        $region18: #{tpu_custom_call.1} parent=11 // pred_check_branch
          %170 = sbr.rel (%p168) target = $region20
        $region19: #{tpu_custom_call.1} parent=11 // pred_region
          _
        $region20: #{tpu_custom_call.1} parent=11 // pred_fallthru
          _
      $region12: #{tpu_custom_call.1} parent=5 // pred_fallthru
        _
      %p171 = scmp.lt.s32.totalorder %s14, 4
      // Predicated region
      $region21: #{tpu_custom_call.1} parent=5 // pred_check
        %p172 = pneg %p171
      $region22: #{tpu_custom_call.1} parent=5 // pred_check_branch
        %174 = sbr.rel (%p172) target = $region24
      $region23: #{tpu_custom_call.1} parent=5 // pred_region
        // Predicated region
        $region25: #{tpu_custom_call.1} parent=23 // pred_check
          %p175 = pneg %p34
        $region26: #{tpu_custom_call.1} parent=23 // pred_check_branch
          %177 = sbr.rel (%p175) target = $region28
        $region27: #{tpu_custom_call.1} parent=23 // pred_region
          %s178 = smul.u32 4, %s14
          %p179 = scmp.lt.s32.totalorder %s178, 15
          %s180 = scalar_select %p179, %s178, 15
          %s181 = smul.addr %s180, 8
          %s182 = scalar_lea.vmem %s0, %s181
          %s183 = smul.u32 4, %s14
        $region28: #{tpu_custom_call.1} parent=23 // pred_fallthru
          _
      $region24: #{tpu_custom_call.1} parent=5 // pred_fallthru
        _
      %p184 = scmp.le.s32.totalorder 1, %s14
      %p185 = scmp.lt.s32.totalorder %s14, 5
      %p186 = pnand %p184, %p185
      %p187 = pneg %p186
      // Predicated region
      $region29: #{tpu_custom_call.1} parent=5 // pred_check
        _
      $region30: #{tpu_custom_call.1} parent=5 // pred_check_branch
        %189 = sbr.rel (%p186) target = $region32
      $region31: #{tpu_custom_call.1} parent=5 // pred_region
        %s190 = ssub.s32 %s14, 1
        %s191 = smul.u32 4, %s19
        %p192 = scmp.lt.s32.totalorder %s191, 15
        %s193 = scalar_select %p192, %s191, 15
        %s194 = smul.addr %s193, 8
        %s195 = scalar_lea.vmem %s0, %s194
        %p196 = pneg %p40
        %p197 = pneg %p37
        %p198 = pneg %p61
        %p199 = pneg %p58
        %p200 = pneg %p82
        %p201 = pneg %p79
        %p202 = pneg %p108
        %p203 = pneg %p105
        %s204 = smul.u32 4, %s19
        %p205 = scmp.lt.s32.totalorder %s204, 15
        %s206 = scalar_select %p205, %s204, 15
        %s207 = smul.addr %s206, 8
        %s208 = scalar_lea.vmem %s3, %s207
        %p209 = pneg %p129
        %p210 = pneg %p126
        %p211 = pneg %p150
        %p212 = pneg %p147
        %s213 = smul.u32 4, %s19
        %p214 = scmp.lt.s32.totalorder %s213, 15
        %s215 = scalar_select %p214, %s213, 15
        %s216 = smul.addr %s215, 8
        %s217 = scalar_lea.vmem %s0, %s216
        %s218 = smul.u32 4, %s19
        %s219 = smul.u32 4, %s19
        %p220 = scmp.lt.s32.totalorder %s219, 15
        %s221 = scalar_select %p220, %s219, 15
        %s222 = smul.addr %s221, 8
        %s223 = scalar_lea.vmem %s3, %s222
        %s224 = smul.u32 4, %s19
        %p225 = scmp.eq.s32.totalorder %s19, 0
        // Predicated region
        $region33: #{tpu_custom_call.1} parent=31 // pred_check
          %p226 = pneg %p225
        $region34: #{tpu_custom_call.1} parent=31 // pred_check_branch
          %228 = sbr.rel (%p226) target = $region36
        $region35: #{tpu_custom_call.1} parent=31 // pred_region
          %229 = vst [vmem:[#allocation2] sm:$0x1] 0.0
          %vm230 = vcmask 0
          %231 = vst.msk [vmem:[#allocation3] sm:$0x1] %vm230, 0.0
        $region36: #{tpu_custom_call.1} parent=31 // pred_fallthru
          _
        %v232 = vld [vmem:[%s217] sm:$0xff]
        %v233 = vld [vmem:[%s217 + $0x8] sm:$0xff]
        %v234 = vld [vmem:[%s217 + $0x10] sm:$0xff]
        %v235 = vld [vmem:[%s217 + $0x18] sm:$0xff]
        %v236 = vld [vmem:[%s1] sm:$0xff]
        %v237 = vld [vmem:[%s1 + $0x8] sm:$0xff]
        %v238 = vld [vmem:[%s1 + $0x10] sm:$0xff]
        %v239 = vld [vmem:[%s1 + $0x18] sm:$0xff]
        %v240 = vld [vmem:[%s1 + $0x20] sm:$0xff]
        %v241 = vld [vmem:[%s1 + $0x28] sm:$0xff]
        %v242 = vld [vmem:[%s1 + $0x30] sm:$0xff]
        %v243 = vld [vmem:[%s1 + $0x38] sm:$0xff]
        %v244 = vld [vmem:[%s1 + $0x40] sm:$0xff]
        %v245 = vld [vmem:[%s1 + $0x48] sm:$0xff]
        %v246 = vld [vmem:[%s1 + $0x50] sm:$0xff]
        %v247 = vld [vmem:[%s1 + $0x58] sm:$0xff]
        %v248 = vld [vmem:[%s1 + $0x60] sm:$0xff]
        %v249 = vld [vmem:[%s1 + $0x68] sm:$0xff]
        %v250 = vld [vmem:[%s1 + $0x70] sm:$0xff]
        %v251 = vld [vmem:[%s1 + $0x78] sm:$0xff]
        %v252 = vmul.f32 %v232, %v232
        %v253 = vmul.f32 %v233, %v233
        %v254 = vmul.f32 %v234, %v234
        %v255 = vmul.f32 %v235, %v235
        %vm256 = vcmask 261120
        %v257 = vsel %vm256, %v252, 0.0
        %258 = vadd.xlane.f32.xlu0 %v257
        %v259 = vpop.xlane.xlu0 %258
        %v260 = vsel %vm256, %v253, 0.0
        %261 = vadd.xlane.f32.xlu0 %v260
        %v262 = vpop.xlane.xlu0 %261
        %v263 = vsel %vm256, %v254, 0.0
        %264 = vadd.xlane.f32.xlu0 %v263
        %v265 = vpop.xlane.xlu0 %264
        %v266 = vsel %vm256, %v255, 0.0
        %267 = vadd.xlane.f32.xlu0 %v266
        %v268 = vpop.xlane.xlu0 %267
        %v270 = vsel %vm256, %v232, 0
        %v273 = vsel %vm256, %v233, 0
        %v276 = vsel %vm256, %v234, 0
        %v279 = vsel %vm256, %v235, 0
        %v282 = vsel %vm256, %v236, 0
        %v285 = vsel %vm256, %v237, 0
        %v288 = vsel %vm256, %v238, 0
        %v291 = vsel %vm256, %v239, 0
        %v294 = vsel %vm256, %v240, 0
        %v297 = vsel %vm256, %v241, 0
        %v300 = vsel %vm256, %v242, 0
        %v303 = vsel %vm256, %v243, 0
        %v306 = vsel %vm256, %v244, 0
        %v309 = vsel %vm256, %v245, 0
        %v312 = vsel %vm256, %v246, 0
        %v315 = vsel %vm256, %v247, 0
        %v318 = vsel %vm256, %v248, 0
        %v321 = vsel %vm256, %v249, 0
        %v324 = vsel %vm256, %v250, 0
        %v327 = vsel %vm256, %v251, 0
        %329 = vmatprep.subr.mxu0 0.0
        %330 = vmatpush1.xpose.msra.mxu0 %v327
        %331 = vmatprep.subr.mxu0 0.0
        %332 = vmatpush1.xpose.msra.mxu0 %v324
        %333 = vmatprep.subr.mxu0 0.0
        %334 = vmatpush1.xpose.msra.mxu0 %v321
        %335 = vmatprep.subr.mxu0 0.0
        %336 = vmatpush1.xpose.msra.mxu0 %v318
        %337 = vmatprep.subr.mxu0 0.0
        %338 = vmatpush1.xpose.msra.mxu0 %v315
        %339 = vmatprep.subr.mxu0 0.0
        %340 = vmatpush1.xpose.msra.mxu0 %v312
        %341 = vmatprep.subr.mxu0 0.0
        %342 = vmatpush1.xpose.msra.mxu0 %v309
        %343 = vmatprep.subr.mxu0 0.0
        %344 = vmatpush1.xpose.msra.mxu0 %v306
        %345 = vmatprep.subr.mxu0 0.0
        %346 = vmatpush1.xpose.msra.mxu0 %v303
        %347 = vmatprep.subr.mxu0 0.0
        %348 = vmatpush1.xpose.msra.mxu0 %v300
        %349 = vmatprep.subr.mxu0 0.0
        %350 = vmatpush1.xpose.msra.mxu0 %v297
        %351 = vmatprep.subr.mxu0 0.0
        %352 = vmatpush1.xpose.msra.mxu0 %v294
        %353 = vmatprep.subr.mxu0 0.0
        %354 = vmatpush1.xpose.msra.mxu0 %v291
        %355 = vmatprep.subr.mxu0 0.0
        %356 = vmatpush1.xpose.msra.mxu0 %v288
        %357 = vmatprep.subr.mxu0 0.0
        %358 = vmatpush1.xpose.msra.mxu0 %v285
        %359 = vmatprep.subr.mxu0 0.0
        %360 = vmatpush1.xpose.msra.mxu0 %v282
        %361 = vmatprep.subr.mxu0 0.0
        %362 = vmatpush2.xpose.msra.mxu0 0.0
        %363 = vmatprep.subr.mxu0 0.0
        %364 = vmatpush2.xpose.msra.mxu0 0.0
        %365 = vmatprep.subr.mxu0 0.0
        %366 = vmatpush2.xpose.msra.mxu0 0.0
        %367 = vmatprep.subr.mxu0 0.0
        %368 = vmatpush2.xpose.msra.mxu0 0.0
        %369 = vmatprep.subr.mxu0 0.0
        %370 = vmatpush2.xpose.msra.mxu0 0.0
        %371 = vmatprep.subr.mxu0 0.0
        %372 = vmatpush2.xpose.msra.mxu0 0.0
        %373 = vmatprep.subr.mxu0 0.0
        %374 = vmatpush2.xpose.msra.mxu0 0.0
        %375 = vmatprep.subr.mxu0 0.0
        %376 = vmatpush2.xpose.msra.mxu0 0.0
        %377 = vmatprep.subr.mxu0 0.0
        %378 = vmatpush2.xpose.msra.mxu0 0.0
        %379 = vmatprep.subr.mxu0 0.0
        %380 = vmatpush2.xpose.msra.mxu0 0.0
        %381 = vmatprep.subr.mxu0 0.0
        %382 = vmatpush2.xpose.msra.mxu0 0.0
        %383 = vmatprep.subr.mxu0 0.0
        %384 = vmatpush2.xpose.msra.mxu0 0.0
        %385 = vmatprep.subr.mxu0 0.0
        %386 = vmatpush2.xpose.msra.mxu0 0.0
        %387 = vmatprep.subr.mxu0 0.0
        %388 = vmatpush2.xpose.msra.mxu0 0.0
        %389 = vmatprep.subr.mxu0 0.0
        %390 = vmatpush2.xpose.msra.mxu0 0.0
        %391 = vmatprep.subr.mxu0 0.0
        %392 = vmatpush2.xpose.msra.mxu0 0.0
        %393 = vmatprep.mubr.f32.mxu0 0.0
        %394 = vmatmul.mubr.f32.gmra.mxu0 %v270
        %v395 = vpop.f32.mrf.mxu0
        %v396 = vadd.f32 0.0, %v395
        %v397 = vpop.f32.mrf.mxu0
        %398 = vmatprep.mubr.f32.mxu0 0.0
        %399 = vmatmul.mubr.f32.gmra.mxu0 %v273
        %v400 = vpop.f32.mrf.mxu0
        %v401 = vadd.f32 0.0, %v400
        %v402 = vpop.f32.mrf.mxu0
        %403 = vmatprep.mubr.f32.mxu0 0.0
        %404 = vmatmul.mubr.f32.gmra.mxu0 %v276
        %v405 = vpop.f32.mrf.mxu0
        %v406 = vadd.f32 0.0, %v405
        %v407 = vpop.f32.mrf.mxu0
        %408 = vmatprep.mubr.f32.mxu0 0.0
        %409 = vmatmul.mubr.f32.gmra.mxu0 %v279
        %v410 = vpop.f32.mrf.mxu0
        %v411 = vadd.f32 0.0, %v410
        %v412 = vpop.f32.mrf.mxu0
        %413 = vdwg.mxu0
        %v414 = vmul.f32 %v396, 2.0
        %v415 = vmul.f32 %v401, 2.0
        %v416 = vmul.f32 %v406, 2.0
        %v417 = vmul.f32 %v411, 2.0
        %v418 = vsub.f32 %v259, %v414
        %v419 = vsub.f32 %v262, %v415
        %v420 = vsub.f32 %v265, %v416
        %v421 = vsub.f32 %v268, %v417
        %v422 = vld [vmem:[%s2] sm:$0x1]
        %v424 = vlaneseq
        %v425 = vshrl.u32 %v424, 7
        %v426 = vsub.s32 0, %v425
        %v427 = vrot.slane %v422, %v426
        %v429 = vadd.f32 %v418, %v427
        %v430 = vadd.f32 %v419, %v427
        %v431 = vadd.f32 %v420, %v427
        %v432 = vadd.f32 %v421, %v427
        %v433 = vlaneseq
        %v434 = vand.u32 %v433, 127
        %435 = vmin.xlane.f32.xlu0 %v429
        %v436 = vpop.xlane.xlu0 %435
        %437 = vmin.xlane.f32.xlu0 %v430
        %v438 = vpop.xlane.xlu0 %437
        %439 = vmin.xlane.f32.xlu0 %v431
        %v440 = vpop.xlane.xlu0 %439
        %441 = vmin.xlane.f32.xlu0 %v432
        %v442 = vpop.xlane.xlu0 %441
        %vm443 = vcmp.eq.f32.partialorder %v429, %v436
        %vm444 = vcmp.eq.f32.partialorder %v430, %v438
        %vm445 = vcmp.eq.f32.partialorder %v431, %v440
        %vm446 = vcmp.eq.f32.partialorder %v432, %v442
        %v447 = vsel %vm443, %v434, 128
        %v448 = vsel %vm444, %v434, 128
        %v449 = vsel %vm445, %v434, 128
        %v450 = vsel %vm446, %v434, 128
        %v451 = vand.u32 %v447, 65535
        %v452 = vshra.s32 %v447, 16
        %v453 = vcvt.s32.f32 %v451
        %v454 = vcvt.s32.f32 %v452
        %455 = vmin.xlane.f32.xlu0 %v454
        %v456 = vpop.xlane.xlu0 %455
        %vm457 = vcmp.eq.f32.partialorder %v454, %v456
        %v458 = vsel %vm457, %v453, inf
        %459 = vmin.xlane.f32.xlu0 %v458
        %v460 = vpop.xlane.xlu0 %459
        %v461 = vcvt.f32.s32 %v460
        %v462 = vcvt.f32.s32 %v456
        %v463 = vshll.u32 %v462, 16
        %v464 = vadd.s32 %v463, %v461
        %v465 = vand.u32 %v448, 65535
        %v466 = vshra.s32 %v448, 16
        %v467 = vcvt.s32.f32 %v465
        %v468 = vcvt.s32.f32 %v466
        %469 = vmin.xlane.f32.xlu0 %v468
        %v470 = vpop.xlane.xlu0 %469
        %vm471 = vcmp.eq.f32.partialorder %v468, %v470
        %v472 = vsel %vm471, %v467, inf
        %473 = vmin.xlane.f32.xlu0 %v472
        %v474 = vpop.xlane.xlu0 %473
        %v475 = vcvt.f32.s32 %v474
        %v476 = vcvt.f32.s32 %v470
        %v477 = vshll.u32 %v476, 16
        %v478 = vadd.s32 %v477, %v475
        %v479 = vand.u32 %v449, 65535
        %v480 = vshra.s32 %v449, 16
        %v481 = vcvt.s32.f32 %v479
        %v482 = vcvt.s32.f32 %v480
        %483 = vmin.xlane.f32.xlu0 %v482
        %v484 = vpop.xlane.xlu0 %483
        %vm485 = vcmp.eq.f32.partialorder %v482, %v484
        %v486 = vsel %vm485, %v481, inf
        %487 = vmin.xlane.f32.xlu0 %v486
        %v488 = vpop.xlane.xlu0 %487
        %v489 = vcvt.f32.s32 %v488
        %v490 = vcvt.f32.s32 %v484
        %v491 = vshll.u32 %v490, 16
        %v492 = vadd.s32 %v491, %v489
        %v493 = vand.u32 %v450, 65535
        %v494 = vshra.s32 %v450, 16
        %v495 = vcvt.s32.f32 %v493
        %v496 = vcvt.s32.f32 %v494
        %497 = vmin.xlane.f32.xlu0 %v496
        %v498 = vpop.xlane.xlu0 %497
        %vm499 = vcmp.eq.f32.partialorder %v496, %v498
        %v500 = vsel %vm499, %v495, inf
        %501 = vmin.xlane.f32.xlu0 %v500
        %v502 = vpop.xlane.xlu0 %501
        %v503 = vcvt.f32.s32 %v502
        %v504 = vcvt.f32.s32 %v498
        %v505 = vshll.u32 %v504, 16
        %v506 = vadd.s32 %v505, %v503
        %vm507 = vcmp.eq.s32.totalorder %v434, %v464
        %vm508 = vcmp.eq.s32.totalorder %v434, %v478
        %vm509 = vcmp.eq.s32.totalorder %v434, %v492
        %vm510 = vcmp.eq.s32.totalorder %v434, %v506
        %v511 = vsel %vm507, 1, 0
        %v512 = vsel %vm508, 1, 0
        %v513 = vsel %vm509, 1, 0
        %v514 = vsel %vm510, 1, 0
        %v515 = vcvt.s32.f32 %v511
        %v516 = vcvt.s32.f32 %v512
        %v517 = vcvt.s32.f32 %v513
        %v518 = vcvt.s32.f32 %v514
        %519 = vmatprep.subr.mxu0 0.0
        %520 = vmatpush1.msra.mxu0 %v251
        %521 = vmatprep.subr.mxu0 0.0
        %522 = vmatpush1.msra.mxu0 %v250
        %523 = vmatprep.subr.mxu0 0.0
        %524 = vmatpush1.msra.mxu0 %v249
        %525 = vmatprep.subr.mxu0 0.0
        %526 = vmatpush1.msra.mxu0 %v248
        %527 = vmatprep.subr.mxu0 0.0
        %528 = vmatpush1.msra.mxu0 %v247
        %529 = vmatprep.subr.mxu0 0.0
        %530 = vmatpush1.msra.mxu0 %v246
        %531 = vmatprep.subr.mxu0 0.0
        %532 = vmatpush1.msra.mxu0 %v245
        %533 = vmatprep.subr.mxu0 0.0
        %534 = vmatpush1.msra.mxu0 %v244
        %535 = vmatprep.subr.mxu0 0.0
        %536 = vmatpush1.msra.mxu0 %v243
        %537 = vmatprep.subr.mxu0 0.0
        %538 = vmatpush1.msra.mxu0 %v242
        %539 = vmatprep.subr.mxu0 0.0
        %540 = vmatpush1.msra.mxu0 %v241
        %541 = vmatprep.subr.mxu0 0.0
        %542 = vmatpush1.msra.mxu0 %v240
        %543 = vmatprep.subr.mxu0 0.0
        %544 = vmatpush1.msra.mxu0 %v239
        %545 = vmatprep.subr.mxu0 0.0
        %546 = vmatpush1.msra.mxu0 %v238
        %547 = vmatprep.subr.mxu0 0.0
        %548 = vmatpush1.msra.mxu0 %v237
        %549 = vmatprep.subr.mxu0 0.0
        %550 = vmatpush1.msra.mxu0 %v236
        %551 = vmatprep.subr.mxu0 0.0
        %552 = vmatpush2.msra.mxu0 0.0
        %553 = vmatprep.subr.mxu0 0.0
        %554 = vmatpush2.msra.mxu0 0.0
        %555 = vmatprep.subr.mxu0 0.0
        %556 = vmatpush2.msra.mxu0 0.0
        %557 = vmatprep.subr.mxu0 0.0
        %558 = vmatpush2.msra.mxu0 0.0
        %559 = vmatprep.subr.mxu0 0.0
        %560 = vmatpush2.msra.mxu0 0.0
        %561 = vmatprep.subr.mxu0 0.0
        %562 = vmatpush2.msra.mxu0 0.0
        %563 = vmatprep.subr.mxu0 0.0
        %564 = vmatpush2.msra.mxu0 0.0
        %565 = vmatprep.subr.mxu0 0.0
        %566 = vmatpush2.msra.mxu0 0.0
        %567 = vmatprep.subr.mxu0 0.0
        %568 = vmatpush2.msra.mxu0 0.0
        %569 = vmatprep.subr.mxu0 0.0
        %570 = vmatpush2.msra.mxu0 0.0
        %571 = vmatprep.subr.mxu0 0.0
        %572 = vmatpush2.msra.mxu0 0.0
        %573 = vmatprep.subr.mxu0 0.0
        %574 = vmatpush2.msra.mxu0 0.0
        %575 = vmatprep.subr.mxu0 0.0
        %576 = vmatpush2.msra.mxu0 0.0
        %577 = vmatprep.subr.mxu0 0.0
        %578 = vmatpush2.msra.mxu0 0.0
        %579 = vmatprep.subr.mxu0 0.0
        %580 = vmatpush2.msra.mxu0 0.0
        %581 = vmatprep.subr.mxu0 0.0
        %582 = vmatpush2.msra.mxu0 0.0
        %583 = vmatprep.mubr.f32.mxu0 0.0
        %584 = vmatmul.mubr.f32.gmra.mxu0 %v515
        %v585 = vpop.f32.mrf.mxu0
        %v586 = vadd.f32 0.0, %v585
        %v587 = vpop.f32.mrf.mxu0
        %588 = vmatprep.mubr.f32.mxu0 0.0
        %589 = vmatmul.mubr.f32.gmra.mxu0 %v516
        %v590 = vpop.f32.mrf.mxu0
        %v591 = vadd.f32 0.0, %v590
        %v592 = vpop.f32.mrf.mxu0
        %593 = vmatprep.mubr.f32.mxu0 0.0
        %594 = vmatmul.mubr.f32.gmra.mxu0 %v517
        %v595 = vpop.f32.mrf.mxu0
        %v596 = vadd.f32 0.0, %v595
        %v597 = vpop.f32.mrf.mxu0
        %598 = vmatprep.mubr.f32.mxu0 0.0
        %599 = vmatmul.mubr.f32.gmra.mxu0 %v518
        %v600 = vpop.f32.mrf.mxu0
        %v601 = vadd.f32 0.0, %v600
        %v602 = vpop.f32.mrf.mxu0
        %603 = vdwg.mxu0
        %604 = vst.msk [vmem:[%s223] sm:$0xff] %vm256, %v586
        %605 = vst.msk [vmem:[%s223 + $0x8] sm:$0xff] %vm256, %v591
        %606 = vst.msk [vmem:[%s223 + $0x10] sm:$0xff] %vm256, %v596
        %607 = vst.msk [vmem:[%s223 + $0x18] sm:$0xff] %vm256, %v601
        %s608 = smul.u32 %s19, 32
        %v609 = vlaneseq
        %v610 = vshrl.u32 %v609, 7
        %v611 = vadd.s32 %v610, 8
        %v612 = vadd.s32 %v610, 16
        %v613 = vadd.s32 %v610, 24
        %v614 = vstv %s608
        %v615 = vadd.s32 %v614, %v610
        %v616 = vadd.s32 %v614, %v611
        %v617 = vadd.s32 %v614, %v612
        %v618 = vadd.s32 %v614, %v613
        %vm619 = vcmp.lt.s32.totalorder %v615, 128
        %vm620 = vcmp.lt.s32.totalorder %v616, 128
        %vm621 = vcmp.lt.s32.totalorder %v617, 128
        %vm622 = vcmp.lt.s32.totalorder %v618, 128
        %v623 = vsel %vm619, 1, 0
        %v624 = vsel %vm620, 1, 0
        %v625 = vsel %vm621, 1, 0
        %v626 = vsel %vm622, 1, 0
        %v627 = vcvt.s32.f32 %v623
        %v628 = vcvt.s32.f32 %v624
        %v629 = vcvt.s32.f32 %v625
        %v630 = vcvt.s32.f32 %v626
        %v631 = vsub.f32 %v232, %v586
        %v632 = vsub.f32 %v233, %v591
        %v633 = vsub.f32 %v234, %v596
        %v634 = vsub.f32 %v235, %v601
        %v635 = vmul.f32 %v631, %v627
        %v636 = vmul.f32 %v632, %v628
        %v637 = vmul.f32 %v633, %v629
        %v638 = vmul.f32 %v634, %v630
        %v639 = vld [vmem:[#allocation3] sm:$0x1]
        %v640 = vmul.f32 %v635, %v635
        %v641 = vmul.f32 %v636, %v636
        %v642 = vmul.f32 %v637, %v637
        %v643 = vmul.f32 %v638, %v638
        %v644 = vsel %vm256, %v640, 0.0
        %v645 = vsel %vm256, %v641, 0.0
        %v646 = vadd.f32 %v644, %v645
        %v647 = vsel %vm256, %v642, 0.0
        %v648 = vadd.f32 %v646, %v647
        %v649 = vsel %vm256, %v643, 0.0
        %v650 = vadd.f32 %v648, %v649
        %651 = vadd.xlane.f32.xlu0 %v650
        %v652 = vpop.xlane.xlu0 %651
        %v653 = vrot.slane %v652, 4
        %v654 = vadd.f32 %v652, %v653
        %v655 = vrot.slane %v654, 2
        %v656 = vadd.f32 %v654, %v655
        %v657 = vrot.slane %v656, 1
        %v658 = vadd.f32 %v656, %v657
        %s659 = vtos %v658
        %v660 = vstv %s659
        %v661 = vadd.f32 %v639, %v660
        %vm662 = vcmask 0
        %663 = vst.msk [vmem:[#allocation3] sm:$0x1] %vm662, %v661
        %v664 = vld [vmem:[#allocation2] sm:$0x1]
        %v665 = vmul.f32 %v515, %v627
        %v666 = vmul.f32 %v516, %v628
        %v667 = vmul.f32 %v517, %v629
        %v668 = vmul.f32 %v518, %v630
        %v669 = vadd.f32 %v665, %v666
        %v670 = vadd.f32 %v669, %v667
        %v671 = vadd.f32 %v670, %v668
        %v672 = vrot.slane %v671, 4
        %v673 = vadd.f32 %v671, %v672
        %v674 = vrot.slane %v673, 2
        %v675 = vadd.f32 %v673, %v674
        %v676 = vrot.slane %v675, 1
        %v677 = vadd.f32 %v675, %v676
        %v678 = vadd.f32 %v664, %v677
        %679 = vst [vmem:[#allocation2] sm:$0x1] %v678
        %p680 = scmp.eq.s32.totalorder %s19, 3
        // Predicated region
        $region37: #{tpu_custom_call.1} parent=31 // pred_check
          %p681 = pneg %p680
        $region38: #{tpu_custom_call.1} parent=31 // pred_check_branch
          %683 = sbr.rel (%p681) target = $region40
        $region39: #{tpu_custom_call.1} parent=31 // pred_region
          %v684 = vld [vmem:[#allocation3] sm:$0x1]
          %v685 = vrcp.pop 4096.0
          %v686 = vmul.f32 %v684, %v685
          %687 = vst.msk [vmem:[#allocation4] sm:$0x1] %vm662, %v686
          %v688 = vld [vmem:[#allocation2] sm:$0x1]
          %vm689 = vcmask 1040384
          %v690 = vsel %vm689, %v688, 0.0
          %691 = vadd.xlane.f32.xlu0 %v690
          %v692 = vpop.xlane.xlu0 %691
          %v693 = vrot.slane %v692, 4
          %v694 = vadd.f32 %v692, %v693
          %v695 = vrot.slane %v694, 2
          %v696 = vadd.f32 %v694, %v695
          %v697 = vrot.slane %v696, 1
          %v698 = vadd.f32 %v696, %v697
          %s699 = vtos %v698
          %v700 = vstv %s699
          %v701 = vrcp.pop %v700
          %v702 = vmul.f32 %v688, %v701
          %v703 = vadd.f32 %v702, 1e-07
          %v704 = vlog2.pop %v703
          %v705 = vmul.f32 %v704, 0.6931472
          %v706 = vmul.f32 %v702, %v705
          %v707 = vsel %vm689, %v706, 0.0
          %708 = vadd.xlane.f32.xlu0 %v707
          %v709 = vpop.xlane.xlu0 %708
          %v710 = vrot.slane %v709, 4
          %v711 = vadd.f32 %v709, %v710
          %v712 = vrot.slane %v711, 2
          %v713 = vadd.f32 %v711, %v712
          %v714 = vrot.slane %v713, 1
          %v715 = vadd.f32 %v713, %v714
          %s716 = vtos %v715
          %v717 = vstv %s716
          %v718 = vsub.f32 0.0, %v717
          %v719 = vmul.f32 %v718, 1.442695
          %v720 = vpow.pop %v719
          %721 = vst.msk [vmem:[#allocation6] sm:$0x1] %vm662, %v720
        $region40: #{tpu_custom_call.1} parent=31 // pred_fallthru
          _
        %s722 = smul.u32 4, %s19
        %p723 = scmp.lt.s32.totalorder %s722, 15
        %s724 = scalar_select %p723, %s722, 15
        %s725 = smul.addr %s724, 8
        %s726 = scalar_lea.vmem %s3, %s725
        // Predicated region
        $region41: #{tpu_custom_call.1} parent=31 // pred_check
          %p727 = pneg %p105
        $region42: #{tpu_custom_call.1} parent=31 // pred_check_branch
          %729 = sbr.rel (%p727) target = $region44
        $region43: #{tpu_custom_call.1} parent=31 // pred_region
          %s730 = smul.u32 4, %s19
        $region44: #{tpu_custom_call.1} parent=31 // pred_fallthru
          _
        // Predicated region
        $region45: #{tpu_custom_call.1} parent=31 // pred_check
          %p731 = pneg %p126
        $region46: #{tpu_custom_call.1} parent=31 // pred_check_branch
          %733 = sbr.rel (%p731) target = $region48
        $region47: #{tpu_custom_call.1} parent=31 // pred_region
          %s735 = ssub.s32 16, 16
          %736 = vsyncadd [#allocation5], %s735
          %s738 = sshll.u32 [#allocation4], 4
          %s739 = int_to_ptr.vmem [resolvable:$true] %s738
          %741 = dma.vmem_to_hbm [thread:$0]  %s739, 16, %s4, [#allocation5]
        $region48: #{tpu_custom_call.1} parent=31 // pred_fallthru
          _
        // Predicated region
        $region49: #{tpu_custom_call.1} parent=31 // pred_check
          %p742 = pneg %p147
        $region50: #{tpu_custom_call.1} parent=31 // pred_check_branch
          %744 = sbr.rel (%p742) target = $region52
        $region51: #{tpu_custom_call.1} parent=31 // pred_region
          %s746 = ssub.s32 16, 16
          %747 = vsyncadd [#allocation7], %s746
          %s749 = sshll.u32 [#allocation6], 4
          %s750 = int_to_ptr.vmem [resolvable:$true] %s749
          %752 = dma.vmem_to_hbm [thread:$0]  %s750, 16, %s5, [#allocation7]
        $region52: #{tpu_custom_call.1} parent=31 // pred_fallthru
          _
        // Predicated region
        $region53: #{tpu_custom_call.1} parent=31 // pred_check
          %p753 = pneg %p126
        $region54: #{tpu_custom_call.1} parent=31 // pred_check_branch
          %755 = sbr.rel (%p753) target = $region56
        $region55: #{tpu_custom_call.1} parent=31 // pred_region
          %756 = dma.done [#allocation5], 16
        $region56: #{tpu_custom_call.1} parent=31 // pred_fallthru
          _
        // Predicated region
        $region57: #{tpu_custom_call.1} parent=31 // pred_check
          %p757 = pneg %p147
        $region58: #{tpu_custom_call.1} parent=31 // pred_check_branch
          %759 = sbr.rel (%p757) target = $region60
        $region59: #{tpu_custom_call.1} parent=31 // pred_region
          %760 = dma.done [#allocation7], 16
        $region60: #{tpu_custom_call.1} parent=31 // pred_fallthru
          _
      $region32: #{tpu_custom_call.1} parent=5 // pred_fallthru
        _
      %p761 = scmp.le.s32.totalorder 2, %s14
      // Predicated region
      $region61: #{tpu_custom_call.1} parent=5 // pred_check
        %p762 = pneg %p761
      $region62: #{tpu_custom_call.1} parent=5 // pred_check_branch
        %764 = sbr.rel (%p762) target = $region64
      $region63: #{tpu_custom_call.1} parent=5 // pred_region
        %s765 = ssub.s32 %s14, 2
        // Predicated region
        $region65: #{tpu_custom_call.1} parent=63 // pred_check
          %p766 = pneg %p111
        $region66: #{tpu_custom_call.1} parent=63 // pred_check_branch
          %768 = sbr.rel (%p766) target = $region68
        $region67: #{tpu_custom_call.1} parent=63 // pred_region
          %s769 = smul.u32 4, %s20
          %p770 = scmp.lt.s32.totalorder %s769, 15
          %s771 = scalar_select %p770, %s769, 15
          %s772 = smul.addr %s771, 8
          %s773 = scalar_lea.vmem %s3, %s772
        $region68: #{tpu_custom_call.1} parent=63 // pred_fallthru
          _
      $region64: #{tpu_custom_call.1} parent=5 // pred_fallthru
        _
    $region6: #{tpu_custom_call.1} parent=1 // loop_footer
      %s18 = sadd.s32 1, %s14
    $region7: #{tpu_custom_call.1} parent=1 // loop_footer_branch
      %13 = sbr.rel target = $region3
    $region8: #{tpu_custom_call.1} parent=1 // loop_exit
      _
    %774 = vsyncpa [#allocation5], 1
    %s775 = scalar_lea.sflag [#allocation5], 1
    %776 = vsyncpa %s775, 1
    %777 = vsyncpa [#allocation7], 1

</llo_original>
